<compile_context>
chip_gen: v6e
topology: v6e:2x2x1
jax: 0.10.0
libtpu: 0.0.40
codegen_flags: <defaults>
</compile_context>

<pallas_src>
import functools

import jax
import jax.numpy as jnp
from jax import lax
from jax.experimental import pallas as pl
from jax.experimental.pallas import tpu as pltpu

_GOOD_LANES = 128  # lane-dense width for the goodness output slab


def _ff_fused_kernel(n_layers, x_ref, *refs):
    """Fused FFModel forward for one batch tile.

    refs = (w0t_ref, b0_ref, w1t_ref, b1_ref, ..., good_ref)
    Every layer runs back-to-back on the resident activation tile; the
    per-sample goodness is accumulated in registers and stored once.
    """
    good_ref = refs[-1]
    layer_refs = refs[:-1]

    out = x_ref[...].astype(jnp.float32)                       # (TB, d0)
    goodness = jnp.zeros((out.shape[0], 1), dtype=jnp.float32)

    for l in range(n_layers):                                  # static unroll
        wt_ref = layer_refs[2 * l]                             # (d_in, d_out) == W.T
        b_ref = layer_refs[2 * l + 1]                          # (1, d_out)

        # __layerNorm: mean / biased variance over dim=1, eps = 1e-4.
        mean = jnp.mean(out, axis=1, keepdims=True)
        centered = out - mean
        var = jnp.mean(centered * centered, axis=1, keepdims=True)
        xn = centered * lax.rsqrt(var + 1e-4)                  # EUP rsqrt, no VPU divide

        # F.linear(xn, W, b) == xn @ W.T + b, then ReLU.
        # NOTE: casting operands to bf16 would double the MXU rate on v6e/v7x;
        # kept f32 to match the PyTorch f32 reference semantics exactly.
        y = jnp.dot(xn, wt_ref[...], preferred_element_type=jnp.float32)
        y = jnp.maximum(y + b_ref[...], 0.0)

        # goodness contribution: out.pow(2).mean(dim=1)
        goodness = goodness + jnp.mean(y * y, axis=1, keepdims=True)
        out = y

    # Single lane-dense store; wrapper slices lane 0.
    good_ref[...] = jnp.broadcast_to(goodness, good_ref.shape)


def _vmem_limit_bytes(tb, dims):
    """Conservative VMEM budget for this kernel, capped below v7x's 64 MiB."""
    est = 2 * tb * dims[0] * 4                       # double-buffered input tile
    est += 2 * tb * _GOOD_LANES * 4                  # double-buffered goodness tile
    for d_in, d_out in zip(dims[:-1], dims[1:]):
        est += 2 * (d_in * d_out + 8 * max(d_out, 128)) * 4   # resident W.T + padded bias
        est += tb * max(d_out, 128) * 4                        # live intermediate activation
    est = 4 * est + (8 << 20)                        # headroom for layout padding / spills
    return int(min(est, 48 << 20))


@jax.jit
def ff_model_forward(x, params):
    """FFModel.forward: sum over layers of mean(relu(linear(LN(x)))**2, dim=1)."""
    B, d0 = x.shape
    dims = [d0] + [wt.shape[1] for wt, _ in params]
    n_layers = len(params)

    # Batch tile: multiple of 8 sublanes, up to 256 rows per step (feeds the MXU
    # a real tile at scale); pad B so the grid divides evenly.
    tb = min(max(8, -(-B // 8) * 8), 256)
    b_pad = -(-B // tb) * tb
    if b_pad != B:
        x = jnp.pad(x, ((0, b_pad - B), (0, 0)))     # zero rows -> discarded goodness

    in_specs = [pl.BlockSpec((tb, d0), lambda i: (i, 0))]
    flat_inputs = [x]
    for (wt, b), d_in, d_out in zip(params, dims[:-1], dims[1:]):
        # Resident across all batch tiles (constant index_map).
        in_specs.append(pl.BlockSpec((d_in, d_out), lambda i: (0, 0)))
        in_specs.append(pl.BlockSpec((1, d_out), lambda i: (0, 0)))
        flat_inputs.append(wt)
        flat_inputs.append(b.reshape(1, d_out))

    # TODO(synk): if dims grow so the resident weight set no longer fits VMEM
    # (watch v7x first), add a trailing "arbitrary" K-reduction grid axis with a
    # pl.when-guarded f32 accumulator instead of whole-weight residency.
    good = pl.pallas_call(
        functools.partial(_ff_fused_kernel, n_layers),
        out_shape=jax.ShapeDtypeStruct((b_pad, _GOOD_LANES), jnp.float32),
        grid=(b_pad // tb,),
        in_specs=in_specs,
        out_specs=pl.BlockSpec((tb, _GOOD_LANES), lambda i: (i, 0)),
        compiler_params=pltpu.CompilerParams(
            dimension_semantics=("parallel",),
            vmem_limit_bytes=_vmem_limit_bytes(tb, dims),
        ),
    )(*flat_inputs)

    return good[:B, 0]


def init_params(dims, key):
    """Deterministic nn.Linear-style init; weights stored pre-transposed (W.T)."""
    params = []
    for d_in, d_out in zip(dims[:-1], dims[1:]):
        key, kw, kb = jax.random.split(key, 3)
        bound = 1.0 / float(d_in) ** 0.5
        w = jax.random.uniform(kw, (d_out, d_in), jnp.float32, -bound, bound)
        b = jax.random.uniform(kb, (d_out,), jnp.float32, -bound, bound)
        params.append((jnp.transpose(w), b))   # transpose once at init, not per forward
    return tuple(params)


def _ref_forward(x, params):
    """Pure-JAX reference of FFModel.forward (for a correctness sanity check)."""
    out = x
    goodness = jnp.zeros((x.shape[0],), jnp.float32)
    for wt, b in params:
        mean = jnp.mean(out, axis=1, keepdims=True)
        var = jnp.mean((out - mean) ** 2, axis=1, keepdims=True)
        xn = (out - mean) / jnp.sqrt(var + 1e-4)
        out = jnp.maximum(xn @ wt + b, 0.0)
        goodness = goodness + jnp.mean(out * out, axis=1)
    return goodness


if __name__ == "__main__":
    # TODO(synk): FFLinear.update (local forward-forward training step with an
    # optimizer) is a training procedure, not part of FFModel.forward; only the
    # inference path is implemented here.
    dims = [32, 64, 32]          # FFModel(dims=...)
    batch = 8

    key = jax.random.PRNGKey(0)
    key, kx = jax.random.split(key)
    x = jax.random.normal(kx, (batch, dims[0]), dtype=jnp.float32)
    params = init_params(dims, key)

    goodness = ff_model_forward(x, params)
    jax.block_until_ready(goodness)
    assert goodness.shape == (batch,)

    ref = _ref_forward(x, params)
    assert jnp.allclose(goodness, ref, rtol=1e-4, atol=1e-4), (goodness, ref)

    print("KERNEL_OK")
</pallas_src>

<mosaic_0001>
module attributes {stable_mosaic.version = 11 : i64} {
  func.func @_ff_fused_kernel(%arg0: i32, %arg1: memref<8x32xf32, #tpu.memory_space<vmem>>, %arg2: memref<32x64xf32, #tpu.memory_space<vmem>>, %arg3: memref<1x64xf32, #tpu.memory_space<vmem>>, %arg4: memref<64x32xf32, #tpu.memory_space<vmem>>, %arg5: memref<1x32xf32, #tpu.memory_space<vmem>>, %arg6: memref<8x128xf32, #tpu.memory_space<vmem>>) attributes {dimension_semantics = [#tpu.dimension_semantics<parallel>], iteration_bounds = array<i64: 1>, scalar_prefetch = 0 : i64, scratch_operands = 0 : i64, tpu.core_type = #tpu.core_type<tc>, window_params = [{transform_indices = @transform_0, window_bounds = array<i64: 8, 32>}, {pipeline_mode = #tpu.pipeline_mode<synchronous>, transform_indices = @transform_1, window_bounds = array<i64: 32, 64>}, {pipeline_mode = #tpu.pipeline_mode<synchronous>, transform_indices = @transform_2, window_bounds = array<i64: 1, 64>}, {pipeline_mode = #tpu.pipeline_mode<synchronous>, transform_indices = @transform_3, window_bounds = array<i64: 64, 32>}, {pipeline_mode = #tpu.pipeline_mode<synchronous>, transform_indices = @transform_4, window_bounds = array<i64: 1, 32>}, {transform_indices = @transform_5, window_bounds = array<i64: 8, 128>}]} {
    %c0 = arith.constant 0 : index
    %c0_0 = arith.constant 0 : index
    %0 = vector.load %arg1[%c0, %c0_0] : memref<8x32xf32, #tpu.memory_space<vmem>>, vector<8x32xf32>
    %cst = arith.constant 0.000000e+00 : f32
    %1 = vector.broadcast %cst : f32 to vector<8x1xf32>
    %cst_1 = arith.constant dense<0.000000e+00> : vector<8xf32>
    %2 = vector.multi_reduction <add>, %0, %cst_1 [1] : vector<8x32xf32> to vector<8xf32>
    %3 = vector.shape_cast %2 : vector<8xf32> to vector<8x1xf32>
    %cst_2 = arith.constant 3.200000e+01 : f32
    %4 = vector.broadcast %cst_2 : f32 to vector<8x1xf32>
    %5 = arith.divf %3, %4 : vector<8x1xf32>
    %6 = vector.broadcast %5 : vector<8x1xf32> to vector<8x32xf32>
    %7 = arith.subf %0, %6 : vector<8x32xf32>
    %8 = arith.mulf %7, %7 : vector<8x32xf32>
    %cst_3 = arith.constant dense<0.000000e+00> : vector<8xf32>
    %9 = vector.multi_reduction <add>, %8, %cst_3 [1] : vector<8x32xf32> to vector<8xf32>
    %10 = vector.shape_cast %9 : vector<8xf32> to vector<8x1xf32>
    %cst_4 = arith.constant 3.200000e+01 : f32
    %11 = vector.broadcast %cst_4 : f32 to vector<8x1xf32>
    %12 = arith.divf %10, %11 : vector<8x1xf32>
    %cst_5 = arith.constant 9.99999974E-5 : f32
    %13 = vector.broadcast %cst_5 : f32 to vector<8x1xf32>
    %14 = arith.addf %12, %13 : vector<8x1xf32>
    %15 = math.rsqrt %14 : vector<8x1xf32>
    %16 = vector.broadcast %15 : vector<8x1xf32> to vector<8x32xf32>
    %17 = arith.mulf %7, %16 : vector<8x32xf32>
    %c0_6 = arith.constant 0 : index
    %c0_7 = arith.constant 0 : index
    %18 = vector.load %arg2[%c0_6, %c0_7] : memref<32x64xf32, #tpu.memory_space<vmem>>, vector<32x64xf32>
    %cst_8 = arith.constant dense<0.000000e+00> : vector<8x64xf32>
    %19 = tpu.matmul %17, %18, %cst_8 {dimension_numbers = #tpu.dot_dimension_numbers<[1], [0], [0], [1], [0, 0, 1, 1], [], []>} : vector<8x32xf32>, vector<32x64xf32>, vector<8x64xf32> -> vector<8x64xf32>
    %c0_9 = arith.constant 0 : index
    %c0_10 = arith.constant 0 : index
    %20 = vector.load %arg3[%c0_9, %c0_10] : memref<1x64xf32, #tpu.memory_space<vmem>>, vector<1x64xf32>
    %21 = vector.broadcast %20 : vector<1x64xf32> to vector<8x64xf32>
    %22 = arith.addf %19, %21 : vector<8x64xf32>
    %cst_11 = arith.constant 0.000000e+00 : f32
    %23 = vector.broadcast %cst_11 : f32 to vector<8x64xf32>
    %24 = arith.maximumf %22, %23 : vector<8x64xf32>
    %25 = arith.mulf %24, %24 : vector<8x64xf32>
    %cst_12 = arith.constant dense<0.000000e+00> : vector<8xf32>
    %26 = vector.multi_reduction <add>, %25, %cst_12 [1] : vector<8x64xf32> to vector<8xf32>
    %27 = vector.shape_cast %26 : vector<8xf32> to vector<8x1xf32>
    %cst_13 = arith.constant 6.400000e+01 : f32
    %28 = vector.broadcast %cst_13 : f32 to vector<8x1xf32>
    %29 = arith.divf %27, %28 : vector<8x1xf32>
    %30 = arith.addf %1, %29 : vector<8x1xf32>
    %cst_14 = arith.constant dense<0.000000e+00> : vector<8xf32>
    %31 = vector.multi_reduction <add>, %24, %cst_14 [1] : vector<8x64xf32> to vector<8xf32>
    %32 = vector.shape_cast %31 : vector<8xf32> to vector<8x1xf32>
    %cst_15 = arith.constant 6.400000e+01 : f32
    %33 = vector.broadcast %cst_15 : f32 to vector<8x1xf32>
    %34 = arith.divf %32, %33 : vector<8x1xf32>
    %35 = vector.broadcast %34 : vector<8x1xf32> to vector<8x64xf32>
    %36 = arith.subf %24, %35 : vector<8x64xf32>
    %37 = arith.mulf %36, %36 : vector<8x64xf32>
    %cst_16 = arith.constant dense<0.000000e+00> : vector<8xf32>
    %38 = vector.multi_reduction <add>, %37, %cst_16 [1] : vector<8x64xf32> to vector<8xf32>
    %39 = vector.shape_cast %38 : vector<8xf32> to vector<8x1xf32>
    %cst_17 = arith.constant 6.400000e+01 : f32
    %40 = vector.broadcast %cst_17 : f32 to vector<8x1xf32>
    %41 = arith.divf %39, %40 : vector<8x1xf32>
    %cst_18 = arith.constant 9.99999974E-5 : f32
    %42 = vector.broadcast %cst_18 : f32 to vector<8x1xf32>
    %43 = arith.addf %41, %42 : vector<8x1xf32>
    %44 = math.rsqrt %43 : vector<8x1xf32>
    %45 = vector.broadcast %44 : vector<8x1xf32> to vector<8x64xf32>
    %46 = arith.mulf %36, %45 : vector<8x64xf32>
    %c0_19 = arith.constant 0 : index
    %c0_20 = arith.constant 0 : index
    %47 = vector.load %arg4[%c0_19, %c0_20] : memref<64x32xf32, #tpu.memory_space<vmem>>, vector<64x32xf32>
    %cst_21 = arith.constant dense<0.000000e+00> : vector<8x32xf32>
    %48 = tpu.matmul %46, %47, %cst_21 {dimension_numbers = #tpu.dot_dimension_numbers<[1], [0], [0], [1], [0, 0, 1, 1], [], []>} : vector<8x64xf32>, vector<64x32xf32>, vector<8x32xf32> -> vector<8x32xf32>
    %c0_22 = arith.constant 0 : index
    %c0_23 = arith.constant 0 : index
    %49 = vector.load %arg5[%c0_22, %c0_23] : memref<1x32xf32, #tpu.memory_space<vmem>>, vector<1x32xf32>
    %50 = vector.broadcast %49 : vector<1x32xf32> to vector<8x32xf32>
    %51 = arith.addf %48, %50 : vector<8x32xf32>
    %cst_24 = arith.constant 0.000000e+00 : f32
    %52 = vector.broadcast %cst_24 : f32 to vector<8x32xf32>
    %53 = arith.maximumf %51, %52 : vector<8x32xf32>
    %54 = arith.mulf %53, %53 : vector<8x32xf32>
    %cst_25 = arith.constant dense<0.000000e+00> : vector<8xf32>
    %55 = vector.multi_reduction <add>, %54, %cst_25 [1] : vector<8x32xf32> to vector<8xf32>
    %56 = vector.shape_cast %55 : vector<8xf32> to vector<8x1xf32>
    %cst_26 = arith.constant 3.200000e+01 : f32
    %57 = vector.broadcast %cst_26 : f32 to vector<8x1xf32>
    %58 = arith.divf %56, %57 : vector<8x1xf32>
    %59 = arith.addf %30, %58 : vector<8x1xf32>
    %60 = vector.shape_cast %59 : vector<8x1xf32> to vector<8x1xf32>
    %61 = vector.broadcast %60 : vector<8x1xf32> to vector<8x128xf32>
    %c0_27 = arith.constant 0 : index
    %c0_28 = arith.constant 0 : index
    %62 = vector.load %arg6[%c0_27, %c0_28] : memref<8x128xf32, #tpu.memory_space<vmem>>, vector<8x128xf32>
    tpu.vector_store %arg6[%c0_27, %c0_28], %61 {strides = array<i32>} : memref<8x128xf32, #tpu.memory_space<vmem>>, vector<8x128xf32>,
    return
  }
  func.func @transform_0(%arg0: i32) -> (i32, i32) {
    %c0_i32 = arith.constant 0 : i32
    %c0_i32_0 = arith.constant 0 : i32
    return %arg0, %c0_i32 : i32, i32
  }
  func.func @transform_1(%arg0: i32) -> (i32, i32) {
    %c0_i32 = arith.constant 0 : i32
    %c0_i32_0 = arith.constant 0 : i32
    %c0_i32_1 = arith.constant 0 : i32
    return %c0_i32, %c0_i32_0 : i32, i32
  }
  func.func @transform_2(%arg0: i32) -> (i32, i32) {
    %c0_i32 = arith.constant 0 : i32
    %c0_i32_0 = arith.constant 0 : i32
    %c0_i32_1 = arith.constant 0 : i32
    return %c0_i32, %c0_i32_0 : i32, i32
  }
  func.func @transform_3(%arg0: i32) -> (i32, i32) {
    %c0_i32 = arith.constant 0 : i32
    %c0_i32_0 = arith.constant 0 : i32
    %c0_i32_1 = arith.constant 0 : i32
    return %c0_i32, %c0_i32_0 : i32, i32
  }
  func.func @transform_4(%arg0: i32) -> (i32, i32) {
    %c0_i32 = arith.constant 0 : i32
    %c0_i32_0 = arith.constant 0 : i32
    %c0_i32_1 = arith.constant 0 : i32
    return %c0_i32, %c0_i32_0 : i32, i32
  }
  func.func @transform_5(%arg0: i32) -> (i32, i32) {
    %c0_i32 = arith.constant 0 : i32
    %c0_i32_0 = arith.constant 0 : i32
    return %arg0, %c0_i32 : i32, i32
  }
}

</mosaic_0001>

<llo_original>
// kernel: ff_model_forward.1
$region0: #{ff_model_forward.1}
  #allocation0 [shape = 'u32[]', space=smem, size = 0x4, offset = 0x4, fixed_abs, tag = 'smem constant byte address 0x4 - core index']
  #allocation1 [shape = 'u32[144,128]{1,0:T(1,128)}', space=vmem, size = 0x12000, scoped, tag = 'internal scratch']
  %s0 = inlined_call_operand.vmem [shape: f32[8,32], index: 0, kind: input, shape index: {}]
  %s1 = inlined_call_operand.vmem [shape: f32[32,64], index: 1, kind: input, shape index: {}]
  %s2 = inlined_call_operand.vmem [shape: f32[1,64], index: 2, kind: input, shape index: {}]
  %s3 = inlined_call_operand.vmem [shape: f32[64,32], index: 3, kind: input, shape index: {}]
  %s4 = inlined_call_operand.vmem [shape: f32[1,32], index: 4, kind: input, shape index: {}]
  %s5 = inlined_call_operand.vmem [shape: f32[8,128], index: 5, kind: output, shape index: {}]
  %s6 = sld [smem:[#allocation0]]
  $region30: #{ff_model_forward.1} parent=0
    _
  %s8 = ssub.s32 1, %s6
  %s9 = scalar_select 0, %s8, %s6
  // Predicated region
  $region2: #{ff_model_forward.1} parent=0 // pred_check
    _
  $region3: #{ff_model_forward.1} parent=0 // pred_check_branch
    %11 = sbr.rel (0) target = $region5
  $region4: #{ff_model_forward.1} parent=0 // pred_region
    _
  $region5: #{ff_model_forward.1} parent=0 // pred_fallthru
    _
  // Predicated region
  $region6: #{ff_model_forward.1} parent=0 // pred_check
    _
  $region7: #{ff_model_forward.1} parent=0 // pred_check_branch
    %13 = sbr.rel (0) target = $region9
  $region8: #{ff_model_forward.1} parent=0 // pred_region
    _
  $region9: #{ff_model_forward.1} parent=0 // pred_fallthru
    _
  // Predicated region
  $region10: #{ff_model_forward.1} parent=0 // pred_check
    _
  $region11: #{ff_model_forward.1} parent=0 // pred_check_branch
    %15 = sbr.rel (0) target = $region13
  $region12: #{ff_model_forward.1} parent=0 // pred_region
    _
  $region13: #{ff_model_forward.1} parent=0 // pred_fallthru
    _
  // Predicated region
  $region14: #{ff_model_forward.1} parent=0 // pred_check
    _
  $region15: #{ff_model_forward.1} parent=0 // pred_check_branch
    %17 = sbr.rel (0) target = $region17
  $region16: #{ff_model_forward.1} parent=0 // pred_region
    _
  $region17: #{ff_model_forward.1} parent=0 // pred_fallthru
    _
  // Predicated region
  $region18: #{ff_model_forward.1} parent=0 // pred_check
    _
  $region19: #{ff_model_forward.1} parent=0 // pred_check_branch
    %19 = sbr.rel (0) target = $region21
  $region20: #{ff_model_forward.1} parent=0 // pred_region
    _
  $region21: #{ff_model_forward.1} parent=0 // pred_fallthru
    _
  %v20 = vld [vmem:[%s0] sm:$0xff]
  %vm21 = vcmask 261120
  %v22 = vsel %vm21, %v20, 0.0
  %23 = vadd.xlane.f32.xlu0 %v22
  %v24 = vpop.xlane.xlu0 %23
  %v25 = vrcp.pop 32.0
  %v26 = vmul.f32 %v24, %v25
  %v27 = vsub.f32 %v20, %v26
  %v28 = vmul.f32 %v27, %v27
  %v29 = vsel %vm21, %v28, 0.0
  %30 = vadd.xlane.f32.xlu0 %v29
  %v31 = vpop.xlane.xlu0 %30
  %v32 = vmul.f32 %v31, %v25
  %v33 = vadd.f32 %v32, 0.0001
  %v34 = vrsqrt.pop %v33
  %v35 = vmul.f32 %v27, %v34
  %v36 = vld [vmem:[%s1] sm:$0xff]
  %v37 = vld [vmem:[%s1 + $0x8] sm:$0xff]
  %v38 = vld [vmem:[%s1 + $0x10] sm:$0xff]
  %v39 = vld [vmem:[%s1 + $0x18] sm:$0xff]
  %v40 = vld [vmem:[%s2] sm:$0x1]
  %v42 = vlaneseq
  %v43 = vshrl.u32 %v42, 7
  %v44 = vsub.s32 0, %v43
  %v45 = vrot.slane %v40, %v44
  %v48 = vsel %vm21, %v35, 0
  %50 = vmatprep.subr.mxu0 0.0
  %51 = vmatpush1.msra.mxu0 0.0
  %52 = vmatprep.subr.mxu0 0.0
  %53 = vmatpush1.msra.mxu0 0.0
  %54 = vmatprep.subr.mxu0 0.0
  %55 = vmatpush1.msra.mxu0 0.0
  %56 = vmatprep.subr.mxu0 0.0
  %57 = vmatpush1.msra.mxu0 0.0
  %58 = vmatprep.subr.mxu0 0.0
  %59 = vmatpush1.msra.mxu0 0.0
  %60 = vmatprep.subr.mxu0 0.0
  %61 = vmatpush1.msra.mxu0 0.0
  %62 = vmatprep.subr.mxu0 0.0
  %63 = vmatpush1.msra.mxu0 0.0
  %64 = vmatprep.subr.mxu0 0.0
  %65 = vmatpush1.msra.mxu0 0.0
  %66 = vmatprep.subr.mxu0 0.0
  %67 = vmatpush1.msra.mxu0 0.0
  %68 = vmatprep.subr.mxu0 0.0
  %69 = vmatpush1.msra.mxu0 0.0
  %70 = vmatprep.subr.mxu0 0.0
  %71 = vmatpush1.msra.mxu0 0.0
  %72 = vmatprep.subr.mxu0 0.0
  %73 = vmatpush1.msra.mxu0 0.0
  %74 = vmatprep.subr.mxu0 0.0
  %75 = vmatpush1.msra.mxu0 %v39
  %76 = vmatprep.subr.mxu0 0.0
  %77 = vmatpush1.msra.mxu0 %v38
  %78 = vmatprep.subr.mxu0 0.0
  %79 = vmatpush1.msra.mxu0 %v37
  %80 = vmatprep.subr.mxu0 0.0
  %81 = vmatpush1.msra.mxu0 %v36
  %82 = vmatprep.subr.mxu0 0.0
  %83 = vmatpush2.msra.mxu0 0.0
  %84 = vmatprep.subr.mxu0 0.0
  %85 = vmatpush2.msra.mxu0 0.0
  %86 = vmatprep.subr.mxu0 0.0
  %87 = vmatpush2.msra.mxu0 0.0
  %88 = vmatprep.subr.mxu0 0.0
  %89 = vmatpush2.msra.mxu0 0.0
  %90 = vmatprep.subr.mxu0 0.0
  %91 = vmatpush2.msra.mxu0 0.0
  %92 = vmatprep.subr.mxu0 0.0
  %93 = vmatpush2.msra.mxu0 0.0
  %94 = vmatprep.subr.mxu0 0.0
  %95 = vmatpush2.msra.mxu0 0.0
  %96 = vmatprep.subr.mxu0 0.0
  %97 = vmatpush2.msra.mxu0 0.0
  %98 = vmatprep.subr.mxu0 0.0
  %99 = vmatpush2.msra.mxu0 0.0
  %100 = vmatprep.subr.mxu0 0.0
  %101 = vmatpush2.msra.mxu0 0.0
  %102 = vmatprep.subr.mxu0 0.0
  %103 = vmatpush2.msra.mxu0 0.0
  %104 = vmatprep.subr.mxu0 0.0
  %105 = vmatpush2.msra.mxu0 0.0
  %106 = vmatprep.subr.mxu0 0.0
  %107 = vmatpush2.msra.mxu0 0.0
  %108 = vmatprep.subr.mxu0 0.0
  %109 = vmatpush2.msra.mxu0 0.0
  %110 = vmatprep.subr.mxu0 0.0
  %111 = vmatpush2.msra.mxu0 0.0
  %112 = vmatprep.subr.mxu0 0.0
  %113 = vmatpush2.msra.mxu0 0.0
  %114 = vmatprep.mubr.f32.mxu0 0.0
  %115 = vmatmul.mubr.f32.gmra.mxu0 %v48
  %v116 = vpop.f32.mrf.mxu0
  %v117 = vadd.f32 %v45, %v116
  %v118 = vpop.f32.mrf.mxu0
  %119 = vdwg.mxu0
  %v120 = vmax.f32 %v117, 0.0
  %v121 = vmul.f32 %v120, %v120
  %vm122 = vcmask 523264
  %v123 = vsel %vm122, %v121, 0.0
  %124 = vadd.xlane.f32.xlu0 %v123
  %v125 = vpop.xlane.xlu0 %124
  %v126 = vrcp.pop 64.0
  %v127 = vmul.f32 %v125, %v126
  %v128 = vadd.f32 %v127, 0.0
  %v129 = vsel %vm122, %v120, 0.0
  %130 = vadd.xlane.f32.xlu0 %v129
  %v131 = vpop.xlane.xlu0 %130
  %v132 = vmul.f32 %v131, %v126
  %v133 = vsub.f32 %v120, %v132
  %v134 = vmul.f32 %v133, %v133
  %v135 = vsel %vm122, %v134, 0.0
  %136 = vadd.xlane.f32.xlu0 %v135
  %v137 = vpop.xlane.xlu0 %136
  %v138 = vmul.f32 %v137, %v126
  %v139 = vadd.f32 %v138, 0.0001
  %v140 = vrsqrt.pop %v139
  %v141 = vmul.f32 %v133, %v140
  %v142 = vld [vmem:[%s3] sm:$0xff]
  %v143 = vld [vmem:[%s3 + $0x8] sm:$0xff]
  %v144 = vld [vmem:[%s3 + $0x10] sm:$0xff]
  %v145 = vld [vmem:[%s3 + $0x18] sm:$0xff]
  %v146 = vld [vmem:[%s3 + $0x20] sm:$0xff]
  %v147 = vld [vmem:[%s3 + $0x28] sm:$0xff]
  %v148 = vld [vmem:[%s3 + $0x30] sm:$0xff]
  %v149 = vld [vmem:[%s3 + $0x38] sm:$0xff]
  %v150 = vld [vmem:[%s4] sm:$0x1]
  %v152 = vlaneseq
  %v153 = vshrl.u32 %v152, 7
  %v154 = vsub.s32 0, %v153
  %v155 = vrot.slane %v150, %v154
  %v158 = vsel %vm122, %v141, 0
  %160 = vmatprep.subr.mxu0 0.0
  %161 = vmatpush1.msra.mxu0 0.0
  %162 = vmatprep.subr.mxu0 0.0
  %163 = vmatpush1.msra.mxu0 0.0
  %164 = vmatprep.subr.mxu0 0.0
  %165 = vmatpush1.msra.mxu0 0.0
  %166 = vmatprep.subr.mxu0 0.0
  %167 = vmatpush1.msra.mxu0 0.0
  %168 = vmatprep.subr.mxu0 0.0
  %169 = vmatpush1.msra.mxu0 0.0
  %170 = vmatprep.subr.mxu0 0.0
  %171 = vmatpush1.msra.mxu0 0.0
  %172 = vmatprep.subr.mxu0 0.0
  %173 = vmatpush1.msra.mxu0 0.0
  %174 = vmatprep.subr.mxu0 0.0
  %175 = vmatpush1.msra.mxu0 0.0
  %176 = vmatprep.subr.mxu0 0.0
  %177 = vmatpush1.msra.mxu0 %v149
  %178 = vmatprep.subr.mxu0 0.0
  %179 = vmatpush1.msra.mxu0 %v148
  %180 = vmatprep.subr.mxu0 0.0
  %181 = vmatpush1.msra.mxu0 %v147
  %182 = vmatprep.subr.mxu0 0.0
  %183 = vmatpush1.msra.mxu0 %v146
  %184 = vmatprep.subr.mxu0 0.0
  %185 = vmatpush1.msra.mxu0 %v145
  %186 = vmatprep.subr.mxu0 0.0
  %187 = vmatpush1.msra.mxu0 %v144
  %188 = vmatprep.subr.mxu0 0.0
  %189 = vmatpush1.msra.mxu0 %v143
  %190 = vmatprep.subr.mxu0 0.0
  %191 = vmatpush1.msra.mxu0 %v142
  %192 = vmatprep.subr.mxu0 0.0
  %193 = vmatpush2.msra.mxu0 0.0
  %194 = vmatprep.subr.mxu0 0.0
  %195 = vmatpush2.msra.mxu0 0.0
  %196 = vmatprep.subr.mxu0 0.0
  %197 = vmatpush2.msra.mxu0 0.0
  %198 = vmatprep.subr.mxu0 0.0
  %199 = vmatpush2.msra.mxu0 0.0
  %200 = vmatprep.subr.mxu0 0.0
  %201 = vmatpush2.msra.mxu0 0.0
  %202 = vmatprep.subr.mxu0 0.0
  %203 = vmatpush2.msra.mxu0 0.0
  %204 = vmatprep.subr.mxu0 0.0
  %205 = vmatpush2.msra.mxu0 0.0
  %206 = vmatprep.subr.mxu0 0.0
  %207 = vmatpush2.msra.mxu0 0.0
  %208 = vmatprep.subr.mxu0 0.0
  %209 = vmatpush2.msra.mxu0 0.0
  %210 = vmatprep.subr.mxu0 0.0
  %211 = vmatpush2.msra.mxu0 0.0
  %212 = vmatprep.subr.mxu0 0.0
  %213 = vmatpush2.msra.mxu0 0.0
  %214 = vmatprep.subr.mxu0 0.0
  %215 = vmatpush2.msra.mxu0 0.0
  %216 = vmatprep.subr.mxu0 0.0
  %217 = vmatpush2.msra.mxu0 0.0
  %218 = vmatprep.subr.mxu0 0.0
  %219 = vmatpush2.msra.mxu0 0.0
  %220 = vmatprep.subr.mxu0 0.0
  %221 = vmatpush2.msra.mxu0 0.0
  %222 = vmatprep.subr.mxu0 0.0
  %223 = vmatpush2.msra.mxu0 0.0
  %224 = vmatprep.mubr.f32.mxu0 0.0
  %225 = vmatmul.mubr.f32.gmra.mxu0 %v158
  %v226 = vpop.f32.mrf.mxu0
  %v227 = vadd.f32 %v155, %v226
  %v228 = vpop.f32.mrf.mxu0
  %229 = vdwg.mxu0
  %v230 = vmax.f32 %v227, 0.0
  %v231 = vmul.f32 %v230, %v230
  %v232 = vsel %vm21, %v231, 0.0
  %233 = vadd.xlane.f32.xlu0 %v232
  %v234 = vpop.xlane.xlu0 %233
  %v235 = vmul.f32 %v234, %v25
  %v236 = vadd.f32 %v128, %v235
  %237 = vst [vmem:[%s5] sm:$0xff] %v236
  // Predicated region
  $region22: #{ff_model_forward.1} parent=0 // pred_check
    _
  $region23: #{ff_model_forward.1} parent=0 // pred_check_branch
    %239 = sbr.rel (0) target = $region25
  $region24: #{ff_model_forward.1} parent=0 // pred_region
    _
  $region25: #{ff_model_forward.1} parent=0 // pred_fallthru
    _
  // Predicated region
  $region26: #{ff_model_forward.1} parent=0 // pred_check
    _
  $region27: #{ff_model_forward.1} parent=0 // pred_check_branch
    %241 = sbr.rel (0) target = $region29
  $region28: #{ff_model_forward.1} parent=0 // pred_region
    _
  $region29: #{ff_model_forward.1} parent=0 // pred_fallthru
    _

</llo_original>
